<compile_context>
chip_gen: v5e
topology: v5e:2x2
jax: 0.10.0
libtpu: 0.0.40
codegen_flags: <defaults>
</compile_context>

<pallas_src>
import functools
import math

import jax
import jax.numpy as jnp
from jax.experimental import pallas as pl
from jax.experimental.pallas import tpu as pltpu


def _zngcn_kernel(*refs, has_bias, has_side2, compute_dtype):
    it = iter(refs)
    sa_ref = next(it)                 # (TK, side_len) compute_dtype (precomputed x @ W_a)
    adj_ref = next(it)                # (TM, TK) native adj dtype
    x_ref = wb_ref = ba_ref = bb_ref = None
    if has_side2:
        x_ref = next(it)              # (TM, F_in)
        wb_ref = next(it)             # (F_in, sb) compute_dtype
    if has_bias:
        ba_ref = next(it)             # (1, side_len) f32
        if has_side2:
            bb_ref = next(it)         # (1, sb) f32
    s1_ref = next(it)                 # (TM, side_len) output
    s2_ref = next(it) if has_side2 else None   # (TM, sb) output
    acc_ref = next(it)                # (TM, side_len) f32 scratch accumulator

    k = pl.program_id(1)

    @pl.when(k == 0)
    def _():
        acc_ref[...] = jnp.zeros_like(acc_ref)

    # Cast the adj tile on the VPU (no wrapper-side N^2 astype pass); bf16
    # operands, f32 accumulation on the MXU.
    adj_t = adj_ref[...].astype(compute_dtype)
    acc_ref[...] += jnp.dot(adj_t, sa_ref[...],
                            preferred_element_type=jnp.float32)

    @pl.when(k == pl.num_programs(1) - 1)
    def _():
        side_1 = acc_ref[...]
        if has_bias:
            side_1 = side_1 + ba_ref[...]
        s1_ref[...] = side_1.astype(s1_ref.dtype)
        if has_side2:
            # side_2 needs only this row tile of x; computed once (at last k).
            x_t = x_ref[...].astype(compute_dtype)
            side_2 = jnp.dot(x_t, wb_ref[...],
                             preferred_element_type=jnp.float32)
            if has_bias:
                side_2 = side_2 + bb_ref[...]
            s2_ref[...] = side_2.astype(s2_ref.dtype)


def _round_up(x, m):
    return ((x + m - 1) // m) * m


def _plan_tiles(n, f_in, side_len, sb, adj_bytes, x_bytes, cd_bytes, budget):
    """VMEM-budget-driven choice of (tm, tk, n_pad).

    tm: adj/output row tile (multiple of 8 or == n_pad).
    tk: adj column (reduction) tile; tk == n_pad means the whole K strip is
        resident and there is a single reduction step per row tile.
    """
    n8 = _round_up(max(n, 1), 8)

    def need(tm, tk):
        return (2 * tm * tk * adj_bytes                       # adj tile, double-buffered
                + 2 * tk * side_len * cd_bytes                # support_a strip
                + (2 * tm * f_in * x_bytes if sb else 0)      # x row tile
                + 2 * tm * (side_len + sb) * 4                # outputs (f32 worst case)
                + tm * side_len * 4                           # f32 accumulator scratch
                + f_in * max(sb, 1) * cd_bytes                # W_b (resident)
                + (1 << 20))                                  # slack for Mosaic internals

    # Preferred: whole-K adj strips, largest row tile that fits the budget.
    cands = [t for t in (1024, 512, 256, 128, 64, 32, 16, 8) if t <= n8]
    if n8 <= 256 and n8 not in cands:
        cands.insert(0, n8)           # minimal padding for small graphs
    for tm in cands:
        n_pad = _round_up(n, tm)
        if need(tm, n_pad) <= budget:
            return tm, n_pad, n_pad

    # Large N: K-tile the adj columns; keep TM sublane-dense and large.
    n_pad = _round_up(n, 512)
    for tm in (512, 256, 128):
        for tk in (4096, 2048, 1024, 512, 256, 128):
            if n_pad % tk:
                continue
            if need(tm, tk) <= budget:
                return tm, tk, n_pad
    return 128, 128, n_pad            # last resort (128 always divides n_pad here)


def zngcn_forward(x, weight1, adj, bias=None, *,
                  compute_dtype=jnp.bfloat16, out_dtype=jnp.float32,
                  vmem_budget_bytes=None):
    """x: (N, F_in), weight1: (F_in, F_out), adj: (N, N) dense, bias: (F_out,) or None."""
    n, f_in = x.shape
    f_out = weight1.shape[1]
    side_len = min(max(f_out // 3, 2), f_out)
    sb = f_out - side_len
    has_side2 = sb > 0
    has_bias = bias is not None

    # ---- Prologue (tiny XLA ops): hoist support_a = x @ W_a out of the grid.
    support_a = jnp.dot(x, weight1[:, :side_len],
                        preferred_element_type=jnp.float32)
    support_a_c = support_a.astype(compute_dtype)
    w_b_c = weight1[:, side_len:].astype(compute_dtype) if has_side2 else None

    # ---- VMEM-budget-aware tile plan + explicit scoped-VMEM limit.
    if vmem_budget_bytes is None:
        try:
            cap = int(pltpu.get_tpu_info().vmem_capacity_bytes)
        except Exception:
            cap = 64 * 1024 * 1024    # conservative default (v7x per-core VMEM)
        vmem_budget_bytes = min(cap * 3 // 4, 100 * 1024 * 1024)
    adj_bytes = jnp.dtype(adj.dtype).itemsize
    x_bytes = jnp.dtype(x.dtype).itemsize
    cd_bytes = jnp.dtype(compute_dtype).itemsize
    tm, tk, n_pad = _plan_tiles(n, f_in, side_len, sb, adj_bytes, x_bytes,
                                cd_bytes, vmem_budget_bytes)

    # ---- Pad awkward N (zero adj cols x zero support_a rows contribute
    # nothing; padded output rows are sliced off).  For very large N, keep adj
    # pre-padded (ideally already in bf16) upstream to skip this pass.
    x_in, adj_in = x, adj
    if n_pad != n:
        pad = n_pad - n
        adj_in = jnp.pad(adj, ((0, pad), (0, pad)))
        x_in = jnp.pad(x, ((0, pad), (0, 0)))
        support_a_c = jnp.pad(support_a_c, ((0, pad), (0, 0)))

    grid = (n_pad // tm, n_pad // tk)

    args = [support_a_c, adj_in]
    in_specs = [
        pl.BlockSpec((tk, side_len), lambda i, k: (k, 0)),    # support_a strip
        pl.BlockSpec((tm, tk), lambda i, k: (i, k)),          # adj tile (dominant stream)
    ]
    if has_side2:
        args += [x_in, w_b_c]
        in_specs += [
            pl.BlockSpec((tm, f_in), lambda i, k: (i, 0)),    # x row tile
            pl.BlockSpec((f_in, sb), lambda i, k: (0, 0)),    # W_b (resident)
        ]
    if has_bias:
        b2d = jnp.asarray(bias, dtype=jnp.float32).reshape(1, f_out)
        args.append(b2d[:, :side_len])
        in_specs.append(pl.BlockSpec((1, side_len), lambda i, k: (0, 0)))
        if has_side2:
            args.append(b2d[:, side_len:])
            in_specs.append(pl.BlockSpec((1, sb), lambda i, k: (0, 0)))

    out_shapes = [jax.ShapeDtypeStruct((n_pad, side_len), out_dtype)]
    out_specs = [pl.BlockSpec((tm, side_len), lambda i, k: (i, 0))]
    if has_side2:
        out_shapes.append(jax.ShapeDtypeStruct((n_pad, sb), out_dtype))
        out_specs.append(pl.BlockSpec((tm, sb), lambda i, k: (i, 0)))

    kernel = functools.partial(_zngcn_kernel, has_bias=has_bias,
                               has_side2=has_side2, compute_dtype=compute_dtype)

    flops = 2 * n_pad * n_pad * side_len + (2 * n_pad * f_in * sb if has_side2 else 0)
    bytes_accessed = (n_pad * n_pad * adj_bytes
                      + grid[0] * n_pad * side_len * cd_bytes   # support_a re-streamed per row tile
                      + (n_pad * f_in * x_bytes if has_side2 else 0)
                      + n_pad * f_out * jnp.dtype(out_dtype).itemsize)

    outs = pl.pallas_call(
        kernel,
        out_shape=tuple(out_shapes) if has_side2 else out_shapes[0],
        grid_spec=pltpu.PrefetchScalarGridSpec(
            num_scalar_prefetch=0,
            grid=grid,
            in_specs=in_specs,
            out_specs=out_specs if has_side2 else out_specs[0],
            scratch_shapes=[pltpu.VMEM((tm, side_len), jnp.float32)]),
        compiler_params=pltpu.CompilerParams(
            dimension_semantics=("parallel", "arbitrary"),
            vmem_limit_bytes=int(vmem_budget_bytes)),
        cost_estimate=pl.CostEstimate(flops=flops, transcendentals=0,
                                      bytes_accessed=bytes_accessed),
    )(*args)

    if has_side2:
        s1, s2 = outs
        # Lane-dense dual outputs; the concat is free wrapper-side plumbing.
        return jnp.concatenate([s1[:n], s2[:n]], axis=1)
    return outs[:n]


def zngcn_reference(x, weight1, adj, bias):
    """Pure-f32 reference matching the PyTorch dense-adj forward."""
    support = x @ weight1
    side_len = max(support.shape[1] // 3, 2)
    side_1 = adj @ support[:, :side_len]
    out = jnp.concatenate([side_1, support[:, side_len:]], axis=1)
    if bias is not None:
        out = out + bias
    return out


def zngcn_reference_mixed(x, weight1, adj, bias, compute_dtype=jnp.bfloat16):
    """Reference matching the kernel's numerics: f32 support_a prologue,
    bf16 MXU operands, f32 accumulation."""
    f_out = weight1.shape[1]
    side_len = min(max(f_out // 3, 2), f_out)
    support_a = jnp.dot(x, weight1[:, :side_len],
                        preferred_element_type=jnp.float32)
    side_1 = jnp.dot(adj.astype(compute_dtype), support_a.astype(compute_dtype),
                     preferred_element_type=jnp.float32)
    if side_len < f_out:
        side_2 = jnp.dot(x.astype(compute_dtype),
                         weight1[:, side_len:].astype(compute_dtype),
                         preferred_element_type=jnp.float32)
        out = jnp.concatenate([side_1, side_2], axis=1)
    else:
        out = side_1
    if bias is not None:
        out = out + bias.astype(jnp.float32)
    return out


if __name__ == "__main__":
    key = jax.random.PRNGKey(0)

    def make_case(k, n, f_in, f_out, with_bias):
        k_x, k_adj, k_w, k_b = jax.random.split(k, 4)
        # Deterministic parameter init mirroring reset_parameters().
        stdv = 6.0 / math.sqrt(f_out + f_in) * 0.6
        w = jax.random.uniform(k_w, (f_in, f_out), minval=-stdv, maxval=stdv,
                               dtype=jnp.float32)
        b = (jax.random.uniform(k_b, (f_out,), minval=-0.1, maxval=0.1,
                                dtype=jnp.float32) if with_bias else None)
        x = jax.random.normal(k_x, (n, f_in), dtype=jnp.float32)
        adj = jax.random.uniform(k_adj, (n, n), dtype=jnp.float32)
        return x, w, adj, b

    k1, k2 = jax.random.split(key)

    # Case 1: module-consistent small shapes, with bias.
    x, w, adj, b = make_case(k1, 16, 32, 24, True)
    out = jax.block_until_ready(zngcn_forward(x, w, adj, b))
    assert out.shape == (16, 24)
    ref_m = zngcn_reference_mixed(x, w, adj, b)
    assert jnp.allclose(out, ref_m, atol=2e-3, rtol=2e-3), \
        "case1 mismatch vs bf16-numerics reference"
    ref_f = zngcn_reference(x, w, adj, b)
    assert jnp.allclose(out, ref_f, atol=2.5e-1, rtol=1e-1), \
        "case1 mismatch vs f32 reference (bf16 rounding)"

    # Case 2: N not a multiple of 8 (exercises the pad + slice path), no bias.
    x, w, adj, b = make_case(k2, 203, 48, 30, False)
    out = jax.block_until_ready(zngcn_forward(x, w, adj, b))
    assert out.shape == (203, 30)
    ref_m = zngcn_reference_mixed(x, w, adj, b)
    assert jnp.allclose(out, ref_m, atol=5e-3, rtol=5e-3), \
        "case2 mismatch vs bf16-numerics reference"
    ref_f = zngcn_reference(x, w, adj, b)
    assert jnp.allclose(out, ref_f, atol=5e-1, rtol=1e-1), \
        "case2 mismatch vs f32 reference (bf16 rounding, loose)"

    print("KERNEL_OK")
</pallas_src>

<mosaic_0001>
module attributes {stable_mosaic.version = 11 : i64} {
  func.func @_zngcn_kernel(%arg0: i32, %arg1: i32, %arg2: memref<16x8xbf16, #tpu.memory_space<vmem>>, %arg3: memref<16x16xf32, #tpu.memory_space<vmem>>, %arg4: memref<16x32xf32, #tpu.memory_space<vmem>>, %arg5: memref<32x16xbf16, #tpu.memory_space<vmem>>, %arg6: memref<1x8xf32, #tpu.memory_space<vmem>>, %arg7: memref<1x16xf32, #tpu.memory_space<vmem>>, %arg8: memref<16x8xf32, #tpu.memory_space<vmem>>, %arg9: memref<16x16xf32, #tpu.memory_space<vmem>>, %arg10: memref<16x8xf32, #tpu.memory_space<vmem>>) attributes {dimension_semantics = [#tpu.dimension_semantics<parallel>, #tpu.dimension_semantics<arbitrary>], iteration_bounds = array<i64: 1, 1>, scalar_prefetch = 0 : i64, scratch_operands = 1 : i64, tpu.core_type = #tpu.core_type<tc>, window_params = [{transform_indices = @transform_0, window_bounds = array<i64: 16, 8>}, {transform_indices = @transform_1, window_bounds = array<i64: 16, 16>}, {transform_indices = @transform_2, window_bounds = array<i64: 16, 32>}, {pipeline_mode = #tpu.pipeline_mode<synchronous>, transform_indices = @transform_3, window_bounds = array<i64: 32, 16>}, {pipeline_mode = #tpu.pipeline_mode<synchronous>, transform_indices = @transform_4, window_bounds = array<i64: 1, 8>}, {pipeline_mode = #tpu.pipeline_mode<synchronous>, transform_indices = @transform_5, window_bounds = array<i64: 1, 16>}, {transform_indices = @transform_6, window_bounds = array<i64: 16, 8>}, {transform_indices = @transform_7, window_bounds = array<i64: 16, 16>}]} {
    %c0_i32 = arith.constant 0 : i32
    %0 = arith.cmpi eq, %arg1, %c0_i32 : i32
    %1 = arith.extui %0 : i1 to i32
    %c0_i32_0 = arith.constant 0 : i32
    %2 = arith.cmpi ne, %1, %c0_i32_0 : i32
    scf.if %2 {
      %cst_10 = arith.constant 0.000000e+00 : f32
      %13 = vector.broadcast %cst_10 : f32 to vector<16x8xf32>
      %c0_11 = arith.constant 0 : index
      %c0_12 = arith.constant 0 : index
      %14 = vector.load %arg10[%c0_11, %c0_12] : memref<16x8xf32, #tpu.memory_space<vmem>>, vector<16x8xf32>
      tpu.vector_store %arg10[%c0_11, %c0_12], %13 {strides = array<i32>} : memref<16x8xf32, #tpu.memory_space<vmem>>, vector<16x8xf32>,
    } else {
    }
    %c0 = arith.constant 0 : index
    %c0_1 = arith.constant 0 : index
    %3 = vector.load %arg3[%c0, %c0_1] : memref<16x16xf32, #tpu.memory_space<vmem>>, vector<16x16xf32>
    %4 = arith.truncf %3 : vector<16x16xf32> to vector<16x16xbf16>
    %c0_2 = arith.constant 0 : index
    %c0_3 = arith.constant 0 : index
    %5 = vector.load %arg10[%c0_2, %c0_3] : memref<16x8xf32, #tpu.memory_space<vmem>>, vector<16x8xf32>
    %c0_4 = arith.constant 0 : index
    %c0_5 = arith.constant 0 : index
    %6 = vector.load %arg2[%c0_4, %c0_5] : memref<16x8xbf16, #tpu.memory_space<vmem>>, vector<16x8xbf16>
    %cst = arith.constant dense<0.000000e+00> : vector<16x8xf32>
    %7 = tpu.matmul %4, %6, %cst {dimension_numbers = #tpu.dot_dimension_numbers<[1], [0], [0], [1], [0, 0, 1, 1], [], []>} : vector<16x16xbf16>, vector<16x8xbf16>, vector<16x8xf32> -> vector<16x8xf32>
    %8 = arith.addf %5, %7 : vector<16x8xf32>
    %c0_6 = arith.constant 0 : index
    %c0_7 = arith.constant 0 : index
    %9 = vector.load %arg10[%c0_6, %c0_7] : memref<16x8xf32, #tpu.memory_space<vmem>>, vector<16x8xf32>
    tpu.vector_store %arg10[%c0_6, %c0_7], %8 {strides = array<i32>} : memref<16x8xf32, #tpu.memory_space<vmem>>, vector<16x8xf32>,
    %c0_i32_8 = arith.constant 0 : i32
    %10 = arith.cmpi eq, %arg1, %c0_i32_8 : i32
    %11 = arith.extui %10 : i1 to i32
    %c0_i32_9 = arith.constant 0 : i32
    %12 = arith.cmpi ne, %11, %c0_i32_9 : i32
    scf.if %12 {
      %c0_10 = arith.constant 0 : index
      %c0_11 = arith.constant 0 : index
      %13 = vector.load %arg10[%c0_10, %c0_11] : memref<16x8xf32, #tpu.memory_space<vmem>>, vector<16x8xf32>
      %c0_12 = arith.constant 0 : index
      %c0_13 = arith.constant 0 : index
      %14 = vector.load %arg6[%c0_12, %c0_13] : memref<1x8xf32, #tpu.memory_space<vmem>>, vector<1x8xf32>
      %15 = vector.broadcast %14 : vector<1x8xf32> to vector<16x8xf32>
      %16 = arith.addf %13, %15 : vector<16x8xf32>
      %c0_14 = arith.constant 0 : index
      %c0_15 = arith.constant 0 : index
      %17 = vector.load %arg8[%c0_14, %c0_15] : memref<16x8xf32, #tpu.memory_space<vmem>>, vector<16x8xf32>
      tpu.vector_store %arg8[%c0_14, %c0_15], %16 {strides = array<i32>} : memref<16x8xf32, #tpu.memory_space<vmem>>, vector<16x8xf32>,
      %c0_16 = arith.constant 0 : index
      %c0_17 = arith.constant 0 : index
      %18 = vector.load %arg4[%c0_16, %c0_17] : memref<16x32xf32, #tpu.memory_space<vmem>>, vector<16x32xf32>
      %19 = arith.truncf %18 : vector<16x32xf32> to vector<16x32xbf16>
      %c0_18 = arith.constant 0 : index
      %c0_19 = arith.constant 0 : index
      %20 = vector.load %arg5[%c0_18, %c0_19] : memref<32x16xbf16, #tpu.memory_space<vmem>>, vector<32x16xbf16>
      %cst_20 = arith.constant dense<0.000000e+00> : vector<16x16xf32>
      %21 = tpu.matmul %19, %20, %cst_20 {dimension_numbers = #tpu.dot_dimension_numbers<[1], [0], [0], [1], [0, 0, 1, 1], [], []>} : vector<16x32xbf16>, vector<32x16xbf16>, vector<16x16xf32> -> vector<16x16xf32>
      %c0_21 = arith.constant 0 : index
      %c0_22 = arith.constant 0 : index
      %22 = vector.load %arg7[%c0_21, %c0_22] : memref<1x16xf32, #tpu.memory_space<vmem>>, vector<1x16xf32>
      %23 = vector.broadcast %22 : vector<1x16xf32> to vector<16x16xf32>
      %24 = arith.addf %21, %23 : vector<16x16xf32>
      %c0_23 = arith.constant 0 : index
      %c0_24 = arith.constant 0 : index
      %25 = vector.load %arg9[%c0_23, %c0_24] : memref<16x16xf32, #tpu.memory_space<vmem>>, vector<16x16xf32>
      tpu.vector_store %arg9[%c0_23, %c0_24], %24 {strides = array<i32>} : memref<16x16xf32, #tpu.memory_space<vmem>>, vector<16x16xf32>,
    } else {
    }
    return
  }
  func.func @transform_0(%arg0: i32, %arg1: i32) -> (i32, i32) {
    %c0_i32 = arith.constant 0 : i32
    %c0_i32_0 = arith.constant 0 : i32
    return %arg1, %c0_i32 : i32, i32
  }
  func.func @transform_1(%arg0: i32, %arg1: i32) -> (i32, i32) {
    %c0_i32 = arith.constant 0 : i32
    return %arg0, %arg1 : i32, i32
  }
  func.func @transform_2(%arg0: i32, %arg1: i32) -> (i32, i32) {
    %c0_i32 = arith.constant 0 : i32
    %c0_i32_0 = arith.constant 0 : i32
    return %arg0, %c0_i32 : i32, i32
  }
  func.func @transform_3(%arg0: i32, %arg1: i32) -> (i32, i32) {
    %c0_i32 = arith.constant 0 : i32
    %c0_i32_0 = arith.constant 0 : i32
    %c0_i32_1 = arith.constant 0 : i32
    return %c0_i32, %c0_i32_0 : i32, i32
  }
  func.func @transform_4(%arg0: i32, %arg1: i32) -> (i32, i32) {
    %c0_i32 = arith.constant 0 : i32
    %c0_i32_0 = arith.constant 0 : i32
    %c0_i32_1 = arith.constant 0 : i32
    return %c0_i32, %c0_i32_0 : i32, i32
  }
  func.func @transform_5(%arg0: i32, %arg1: i32) -> (i32, i32) {
    %c0_i32 = arith.constant 0 : i32
    %c0_i32_0 = arith.constant 0 : i32
    %c0_i32_1 = arith.constant 0 : i32
    return %c0_i32, %c0_i32_0 : i32, i32
  }
  func.func @transform_6(%arg0: i32, %arg1: i32) -> (i32, i32) {
    %c0_i32 = arith.constant 0 : i32
    %c0_i32_0 = arith.constant 0 : i32
    return %arg0, %c0_i32 : i32, i32
  }
  func.func @transform_7(%arg0: i32, %arg1: i32) -> (i32, i32) {
    %c0_i32 = arith.constant 0 : i32
    %c0_i32_0 = arith.constant 0 : i32
    return %arg0, %c0_i32 : i32, i32
  }
}

</mosaic_0001>

<llo_original>
// kernel: tpu_custom_call.1
$region0: #{tpu_custom_call.1}
  #allocation0 [shape = 'u32[]', space=smem, size = 0x4, offset = 0x4, fixed_abs, tag = 'smem constant byte address 0x4 - core index']
  #allocation1 [shape = 'u32[72,128]{1,0:T(1,128)}', space=vmem, size = 0x9000, scoped, tag = 'internal scratch']
  #allocation2 [shape = 'f32[16,8]{1,0:T(8,128)}', space=vmem, size = 0x2000, scoped, tag = 'scratch operand']
  %s0 = inlined_call_operand.vmem [shape: bf16[16,8], index: 0, kind: input, shape index: {}]
  %s1 = inlined_call_operand.vmem [shape: f32[16,16], index: 1, kind: input, shape index: {}]
  %s2 = inlined_call_operand.vmem [shape: f32[16,32], index: 2, kind: input, shape index: {}]
  %s3 = inlined_call_operand.vmem [shape: bf16[32,16], index: 3, kind: input, shape index: {}]
  %s4 = inlined_call_operand.vmem [shape: f32[1,8], index: 4, kind: input, shape index: {}]
  %s5 = inlined_call_operand.vmem [shape: f32[1,16], index: 5, kind: input, shape index: {}]
  %s6 = inlined_call_operand.vmem [shape: f32[16,8], index: 6, kind: output, shape index: {0}]
  %s7 = inlined_call_operand.hbm [shape: f32[16,16], index: 7, kind: output, shape index: {1}]
  %8 = xla_tuple %s6, %s7
  %s9 = sld [smem:[#allocation0]]
  $region50: #{tpu_custom_call.1} parent=0
    _
  %s11 = ssub.s32 1, %s9
  %s12 = scalar_select 0, %s11, %s9
  $region1: #{tpu_custom_call.1} parent=0
    #allocation3 [shape = 'u8[8192]{0}', space=vmem, size = 0x2000, scoped, tag = 'output window, operand 1, single buffered']
    #allocation4 [shape = 's32[1]{0}', space=sflag, size = 0x4, scoped, tag = 'scoped memory for tpu_custom_call.1']
    %13 = vsyncpa [#allocation4], 0
    // Predicated region
    $region2: #{tpu_custom_call.1} parent=1 // pred_check
      _
    $region3: #{tpu_custom_call.1} parent=1 // pred_check_branch
      %15 = sbr.rel (0) target = $region5
    $region4: #{tpu_custom_call.1} parent=1 // pred_region
      _
    $region5: #{tpu_custom_call.1} parent=1 // pred_fallthru
      _
    // Predicated region
    $region6: #{tpu_custom_call.1} parent=1 // pred_check
      _
    $region7: #{tpu_custom_call.1} parent=1 // pred_check_branch
      %17 = sbr.rel (0) target = $region9
    $region8: #{tpu_custom_call.1} parent=1 // pred_region
      _
    $region9: #{tpu_custom_call.1} parent=1 // pred_fallthru
      _
    // Predicated region
    $region10: #{tpu_custom_call.1} parent=1 // pred_check
      _
    $region11: #{tpu_custom_call.1} parent=1 // pred_check_branch
      %19 = sbr.rel (0) target = $region13
    $region12: #{tpu_custom_call.1} parent=1 // pred_region
      _
    $region13: #{tpu_custom_call.1} parent=1 // pred_fallthru
      _
    // Predicated region
    $region14: #{tpu_custom_call.1} parent=1 // pred_check
      _
    $region15: #{tpu_custom_call.1} parent=1 // pred_check_branch
      %21 = sbr.rel (0) target = $region17
    $region16: #{tpu_custom_call.1} parent=1 // pred_region
      _
    $region17: #{tpu_custom_call.1} parent=1 // pred_fallthru
      _
    // Predicated region
    $region18: #{tpu_custom_call.1} parent=1 // pred_check
      _
    $region19: #{tpu_custom_call.1} parent=1 // pred_check_branch
      %23 = sbr.rel (0) target = $region21
    $region20: #{tpu_custom_call.1} parent=1 // pred_region
      _
    $region21: #{tpu_custom_call.1} parent=1 // pred_fallthru
      _
    // Predicated region
    $region22: #{tpu_custom_call.1} parent=1 // pred_check
      _
    $region23: #{tpu_custom_call.1} parent=1 // pred_check_branch
      %25 = sbr.rel (0) target = $region25
    $region24: #{tpu_custom_call.1} parent=1 // pred_region
      _
    $region25: #{tpu_custom_call.1} parent=1 // pred_fallthru
      _
    %p27 = scmp.eq.s32.totalorder 0, 0
    // Predicated region
    $region26: #{tpu_custom_call.1} parent=1 // pred_check
      %p28 = pneg %p27
    $region27: #{tpu_custom_call.1} parent=1 // pred_check_branch
      %30 = sbr.rel (%p28) target = $region29
    $region28: #{tpu_custom_call.1} parent=1 // pred_region
      %vm31 = vcmask 64512
      %32 = vst.msk [vmem:[#allocation2] sm:$0xff] %vm31, 0.0
      %33 = vst.msk [vmem:[#allocation2 + $0x8] sm:$0xff] %vm31, 0.0
    $region29: #{tpu_custom_call.1} parent=1 // pred_fallthru
      _
    %v34 = vld [vmem:[%s1] sm:$0xff]
    %v35 = vld [vmem:[%s1 + $0x8] sm:$0xff]
    %v36 = vpack.c.bf16 %v35, %v34
    %v37 = vld [vmem:[#allocation2] sm:$0xff]
    %v38 = vld [vmem:[#allocation2 + $0x8] sm:$0xff]
    %v39 = vld [vmem:[%s0] sm:$0xf]
    %v40 = vld [vmem:[%s0 + $0x4] sm:$0xf]
    %v43 = vunpack.c.l.b16 %v39
    %v44 = vunpack.c.l.b16 %v40
    %v45 = vpack.c.b16 %v44, %v43
    %vm47 = vcmask 130048
    %v49 = vsel %vm47, %v36, 0
    %51 = vmatpush.bf16.msra.mxu0 0
    %52 = vmatpush.bf16.msra.mxu0 0
    %53 = vmatpush.bf16.msra.mxu0 0
    %54 = vmatpush.bf16.msra.mxu0 0
    %55 = vmatpush.bf16.msra.mxu0 0
    %56 = vmatpush.bf16.msra.mxu0 0
    %57 = vmatpush.bf16.msra.mxu0 0
    %58 = vmatpush.bf16.msra.mxu0 %v45
    %59 = vmatmul.bf16.gmra.mxu0 %v49
    %v60 = vpop.f32.mrf.mxu0
    %v61 = vadd.f32 0.0, %v60
    %v62 = vpop.f32.mrf.mxu0
    %v63 = vadd.f32 0.0, %v62
    %64 = vdwg.mxu0
    %v65 = vadd.f32 %v37, %v61
    %v66 = vadd.f32 %v38, %v63
    %vm67 = vcmask 64512
    %68 = vst.msk [vmem:[#allocation2] sm:$0xff] %vm67, %v65
    %69 = vst.msk [vmem:[#allocation2 + $0x8] sm:$0xff] %vm67, %v66
    // Predicated region
    $region30: #{tpu_custom_call.1} parent=1 // pred_check
      %p70 = pneg %p27
    $region31: #{tpu_custom_call.1} parent=1 // pred_check_branch
      %72 = sbr.rel (%p70) target = $region33
    $region32: #{tpu_custom_call.1} parent=1 // pred_region
      %v73 = vld [vmem:[#allocation2] sm:$0xff]
      %v74 = vld [vmem:[#allocation2 + $0x8] sm:$0xff]
      %v75 = vld [vmem:[%s4] sm:$0x1]
      %v77 = vperm.slane %v75, 0
      %v79 = vadd.f32 %v73, %v77
      %v80 = vadd.f32 %v74, %v77
      %81 = vst.msk [vmem:[%s6] sm:$0xff] %vm67, %v79
      %82 = vst.msk [vmem:[%s6 + $0x8] sm:$0xff] %vm67, %v80
      %v83 = vld [vmem:[%s2] sm:$0xff]
      %v84 = vld [vmem:[%s2 + $0x8] sm:$0xff]
      %v85 = vpack.c.bf16 %v84, %v83
      %v86 = vld [vmem:[%s3] sm:$0xf]
      %v87 = vld [vmem:[%s3 + $0x4] sm:$0xf]
      %v88 = vld [vmem:[%s3 + $0x8] sm:$0xf]
      %v89 = vld [vmem:[%s3 + $0xc] sm:$0xf]
      %v90 = vld [vmem:[%s5] sm:$0x1]
      %v92 = vperm.slane %v90, 0
      %v98 = vunpack.c.l.b16 %v86
      %v99 = vunpack.c.l.b16 %v87
      %v100 = vunpack.c.l.b16 %v88
      %v101 = vunpack.c.l.b16 %v89
      %v102 = vpack.c.b16 %v99, %v98
      %v103 = vpack.c.b16 %v101, %v100
      %vm106 = vcmask 261120
      %v108 = vsel %vm106, %v85, 0
      %110 = vmatpush.bf16.msra.mxu0 0
      %111 = vmatpush.bf16.msra.mxu0 0
      %112 = vmatpush.bf16.msra.mxu0 0
      %113 = vmatpush.bf16.msra.mxu0 0
      %114 = vmatpush.bf16.msra.mxu0 0
      %115 = vmatpush.bf16.msra.mxu0 0
      %116 = vmatpush.bf16.msra.mxu0 %v103
      %117 = vmatpush.bf16.msra.mxu0 %v102
      %118 = vmatmul.bf16.gmra.mxu0 %v108
      %v119 = vpop.f32.mrf.mxu0
      %v120 = vadd.f32 %v92, %v119
      %v121 = vpop.f32.mrf.mxu0
      %v122 = vadd.f32 %v92, %v121
      %123 = vdwg.mxu0
      %124 = vst.msk [vmem:[#allocation3] sm:$0xff] %vm47, %v120
      %125 = vst.msk [vmem:[#allocation3 + $0x8] sm:$0xff] %vm47, %v122
    $region33: #{tpu_custom_call.1} parent=1 // pred_fallthru
      _
    // Predicated region
    $region34: #{tpu_custom_call.1} parent=1 // pred_check
      _
    $region35: #{tpu_custom_call.1} parent=1 // pred_check_branch
      %127 = sbr.rel (0) target = $region37
    $region36: #{tpu_custom_call.1} parent=1 // pred_region
      _
    $region37: #{tpu_custom_call.1} parent=1 // pred_fallthru
      _
    // Predicated region
    $region38: #{tpu_custom_call.1} parent=1 // pred_check
      _
    $region39: #{tpu_custom_call.1} parent=1 // pred_check_branch
      %129 = sbr.rel (0) target = $region41
    $region40: #{tpu_custom_call.1} parent=1 // pred_region
      %131 = vsyncadd [#allocation4], 0
      %s132 = sshll.u32 [#allocation3], 4
      %s133 = int_to_ptr.vmem [resolvable:$true] %s132
      %s134 = sshll.u32 %s7, 4
      %s135 = int_to_ptr.hbm [resolvable:$true] %s134
      %140 = dma.vmem_to_hbm [thread:$0]  %s133, 256, %s135, [#allocation4], 128, 128, 8
    $region41: #{tpu_custom_call.1} parent=1 // pred_fallthru
      _
    // Predicated region
    $region42: #{tpu_custom_call.1} parent=1 // pred_check
      _
    $region43: #{tpu_custom_call.1} parent=1 // pred_check_branch
      %142 = sbr.rel (0) target = $region45
    $region44: #{tpu_custom_call.1} parent=1 // pred_region
      _
    $region45: #{tpu_custom_call.1} parent=1 // pred_fallthru
      _
    // Predicated region
    $region46: #{tpu_custom_call.1} parent=1 // pred_check
      _
    $region47: #{tpu_custom_call.1} parent=1 // pred_check_branch
      %144 = sbr.rel (0) target = $region49
    $region48: #{tpu_custom_call.1} parent=1 // pred_region
      %146 = dma.done [#allocation4], 256
    $region49: #{tpu_custom_call.1} parent=1 // pred_fallthru
      _
    %147 = vsyncpa [#allocation4], 1

</llo_original>
